<compile_context>
chip_gen: v7x
topology: tpu7x:2x2x1
jax: 0.10.0
libtpu: 0.0.40
codegen_flags: <defaults>
</compile_context>

<pallas_src>
import math
from functools import partial

import jax
import jax.numpy as jnp
from jax.experimental import pallas as pl
from jax.experimental.pallas import tpu as pltpu

_SQRT_2_OVER_PI = math.sqrt(2.0 / math.pi)

_COL_CANDIDATES = (2048, 1024, 512, 256, 128)   # lane-dense widths (multiples of 128)
_BLOCK_BYTES_SINGLE_CORE = 8 * 1024 * 1024      # one TC: big blocks amortize step cost
_BLOCK_BYTES_MULTI_CORE = 4 * 1024 * 1024       # 2 TCs (v7x): keep VMEM per-TC comfy
_BLOCK_BYTES_FLOOR = 1 * 1024 * 1024            # don't shrink blocks below ~1 MiB


def _gelu_kernel(x_ref, o_ref, *, compute_dtype):
    x = x_ref[...].astype(compute_dtype)
    a = jnp.asarray(_SQRT_2_OVER_PI, compute_dtype)
    ac = jnp.asarray(_SQRT_2_OVER_PI * 0.044715, compute_dtype)
    half = jnp.asarray(0.5, compute_dtype)
    inner = x * (a + ac * (x * x))       # sqrt(2/pi) * (x + 0.044715*x^3), factored
    t = jnp.tanh(inner)                  # single EUP op
    h = half * x
    o_ref[...] = (h + h * t).astype(o_ref.dtype)


def _gelu_jnp(x):
    # Plain-XLA path for tiny inputs / ragged tails.
    xf = x.astype(jnp.float32)
    y = 0.5 * xf * (1.0 + jnp.tanh(_SQRT_2_OVER_PI * (xf + 0.044715 * xf * xf * xf)))
    return y.astype(x.dtype)


def _tpu_generation_and_cores():
    """Best-effort (generation, TensorCores per device); (0, 1) if unknown."""
    try:
        dev = jax.devices()[0]
    except Exception:
        return 0, 1
    kind = str(getattr(dev, "device_kind", "")).lower()
    gen = 0
    for g in (7, 6, 5, 4, 3, 2):
        if str(g) in kind:
            gen = g
            break
    cores = getattr(dev, "num_cores", None)
    if not isinstance(cores, int) or cores <= 0:
        # v7x exposes 2 TensorCores per chip; v4/v5p are megacore (2 TCs).
        cores = 2 if (gen >= 7 or "v4" in kind or "v5p" in kind) else 1
    return gen, cores


def _sublane_pack(itemsize):
    # rows per sublane tile: 8 (4-byte), 16 (2-byte), 32 (1-byte)
    return max(8, 32 // max(int(itemsize), 1))


def _pick_cols(n):
    for c in _COL_CANDIDATES:
        if n % c == 0:
            return c
    return None


def _choose_block_rows(rows, cols, itemsize, pack, cores):
    row_bytes = cols * itemsize
    target = _BLOCK_BYTES_MULTI_CORE if cores > 1 else _BLOCK_BYTES_SINGLE_CORE
    tr = max(pack, (target // row_bytes) // pack * pack)
    if cores > 1 and rows > pack:
        # Prefer >= 2*cores blocks so ("parallel",) shards across TensorCores,
        # but never shrink below ~1 MiB per block.
        want = -(-rows // (2 * cores))                    # ceil(rows / (2*cores))
        want = max(pack, -(-want // pack) * pack)         # round up to pack
        floor_rows = max(pack, (_BLOCK_BYTES_FLOOR // row_bytes) // pack * pack)
        tr = min(tr, max(want, floor_rows))
    return min(tr, rows)


def _compute_dtype_for(dtype, gen):
    d = jnp.dtype(dtype)
    if d == jnp.dtype(jnp.bfloat16) and gen >= 6:
        return jnp.bfloat16          # native bf16 VPU/EUP on v6e/v7x
    return jnp.float32               # f32 math for f32 I/O and on v5e


def _run_pallas_gelu(x2, *, gen, cores, max_block_bytes=None):
    rows, cols = x2.shape
    itemsize = jnp.dtype(x2.dtype).itemsize
    pack = _sublane_pack(itemsize)
    tr = _choose_block_rows(rows, cols, itemsize, pack, cores)
    if max_block_bytes is not None:
        cap = max(pack, (max_block_bytes // (cols * itemsize)) // pack * pack)
        tr = min(tr, cap, rows)
    grid = (pl.cdiv(rows, tr),)

    block_bytes = tr * cols * itemsize
    # double-buffered in + out (4x) plus headroom, clamped to be safe on v7x.
    vmem_limit = int(min(64 * 1024 * 1024,
                         max(16 * 1024 * 1024, 6 * block_bytes + (4 << 20))))
    n_elems = rows * cols
    kernel = partial(_gelu_kernel, compute_dtype=_compute_dtype_for(x2.dtype, gen))

    return pl.pallas_call(
        kernel,
        out_shape=jax.ShapeDtypeStruct((rows, cols), x2.dtype),
        grid_spec=pltpu.PrefetchScalarGridSpec(
            num_scalar_prefetch=0,
            grid=grid,
            in_specs=[pl.BlockSpec((tr, cols), lambda i: (i, 0))],
            out_specs=pl.BlockSpec((tr, cols), lambda i: (i, 0)),
        ),
        compiler_params=pltpu.CompilerParams(
            dimension_semantics=("parallel",),
            vmem_limit_bytes=vmem_limit,
        ),
        cost_estimate=pl.CostEstimate(
            flops=7 * n_elems,
            transcendentals=n_elems,
            bytes_accessed=2 * n_elems * itemsize,
        ),
    )(x2)


def gelu(x, *, fast_path_threshold=1 << 15, max_block_bytes=None):
    """Tanh-approx GELU (matches the PyTorch module). Any shape, elementwise."""
    orig_shape = x.shape
    n = x.size
    if n == 0:
        return x
    if n < fast_path_threshold:
        return _gelu_jnp(x)

    gen, cores = _tpu_generation_and_cores()
    flat = x.reshape(-1)

    cols = _pick_cols(n)
    if cols is not None:
        # Zero-copy lane-dense view; cdiv grid handles a ragged last row-block,
        # so there is no pad and no un-pad slice.
        rows = n // cols
        out = _run_pallas_gelu(flat.reshape(rows, cols), gen=gen, cores=cores,
                               max_block_bytes=max_block_bytes)
        return out.reshape(orig_shape)

    # Unaligned element count: kernel on the aligned prefix, tiny tail in XLA.
    itemsize = jnp.dtype(x.dtype).itemsize
    pack = _sublane_pack(itemsize)
    cols = 1024
    chunk = pack * cols
    main_n = (n // chunk) * chunk
    if main_n == 0:
        return _gelu_jnp(x)
    rows = main_n // cols
    main = _run_pallas_gelu(flat[:main_n].reshape(rows, cols), gen=gen, cores=cores,
                            max_block_bytes=max_block_bytes)
    tail = _gelu_jnp(flat[main_n:])
    return jnp.concatenate([main.reshape(-1), tail]).reshape(orig_shape)


def gelu_ref(x):
    c = math.sqrt(2.0 / math.pi)
    return 0.5 * x * (1.0 + jnp.tanh(c * (x + 0.044715 * jnp.power(x, 3))))


if __name__ == "__main__":
    key = jax.random.PRNGKey(0)
    k1, k2, k3, k4 = jax.random.split(key, 4)

    # (1) Small transformer-activation shape (batch=2, seq=8, hidden=32), f32.
    #     Forced through the Pallas path: single full-array (1, 512) block.
    x_small = jax.random.normal(k1, (2, 8, 32), dtype=jnp.float32)
    y_small = gelu(x_small, fast_path_threshold=0)
    jax.block_until_ready(y_small)
    assert y_small.shape == x_small.shape and y_small.dtype == x_small.dtype
    assert jnp.allclose(y_small, gelu_ref(x_small), atol=2e-5, rtol=2e-5), \
        "small-shape mismatch vs reference"

    # (2) Non-aligned 2-D slab: aligned-prefix kernel + tiny XLA tail (no pad).
    x_med = jax.random.normal(k2, (300, 700), dtype=jnp.float32)
    y_med = gelu(x_med, fast_path_threshold=0)
    jax.block_until_ready(y_med)
    assert y_med.shape == x_med.shape
    assert jnp.allclose(y_med, gelu_ref(x_med), atol=2e-5, rtol=2e-5), \
        "medium-shape mismatch vs reference"

    # (3) Multi-block grid (forced small block budget) on an aligned slab.
    x_grid = jax.random.normal(k3, (64, 2048), dtype=jnp.float32)
    y_grid = gelu(x_grid, fast_path_threshold=0, max_block_bytes=64 * 1024)
    jax.block_until_ready(y_grid)
    assert jnp.allclose(y_grid, gelu_ref(x_grid), atol=2e-5, rtol=2e-5), \
        "multi-block mismatch vs reference"

    # (4) bf16 input: dtype-aware sublane packing (16) + native bf16 math on v6e/v7x.
    x_bf16 = jax.random.normal(k4, (2, 128, 256), dtype=jnp.bfloat16)
    y_bf16 = gelu(x_bf16, fast_path_threshold=0)
    jax.block_until_ready(y_bf16)
    assert y_bf16.shape == x_bf16.shape and y_bf16.dtype == jnp.bfloat16
    assert jnp.allclose(y_bf16.astype(jnp.float32),
                        gelu_ref(x_bf16.astype(jnp.float32)),
                        atol=5e-2, rtol=5e-2), "bf16 mismatch vs reference"

    # (5) Plain-XLA fast path for tiny inputs.
    y_fast = gelu(x_small)
    assert jnp.allclose(y_fast, gelu_ref(x_small), atol=2e-5, rtol=2e-5), \
        "fast-path mismatch vs reference"

    print("KERNEL_OK")
</pallas_src>

<mosaic_0001>
module attributes {stable_mosaic.version = 11 : i64} {
  func.func @_gelu_kernel(%arg0: i32, %arg1: memref<1x512xf32, #tpu.memory_space<vmem>>, %arg2: memref<1x512xf32, #tpu.memory_space<vmem>>) attributes {dimension_semantics = [#tpu.dimension_semantics<parallel>], iteration_bounds = array<i64: 1>, scalar_prefetch = 0 : i64, scratch_operands = 0 : i64, tpu.core_type = #tpu.core_type<tc>, window_params = [{transform_indices = @transform_0, window_bounds = array<i64: 1, 512>}, {transform_indices = @transform_1, window_bounds = array<i64: 1, 512>}]} {
    %c0 = arith.constant 0 : index
    %c0_0 = arith.constant 0 : index
    %0 = vector.load %arg1[%c0, %c0_0] : memref<1x512xf32, #tpu.memory_space<vmem>>, vector<1x512xf32>
    %1 = arith.mulf %0, %0 : vector<1x512xf32>
    %cst = arith.constant 0.0356774069 : f32
    %2 = vector.broadcast %cst : f32 to vector<1x512xf32>
    %3 = arith.mulf %2, %1 : vector<1x512xf32>
    %cst_1 = arith.constant 0.797884583 : f32
    %4 = vector.broadcast %cst_1 : f32 to vector<1x512xf32>
    %5 = arith.addf %4, %3 : vector<1x512xf32>
    %6 = arith.mulf %0, %5 : vector<1x512xf32>
    %7 = math.tanh %6 : vector<1x512xf32>
    %cst_2 = arith.constant 5.000000e-01 : f32
    %8 = vector.broadcast %cst_2 : f32 to vector<1x512xf32>
    %9 = arith.mulf %8, %0 : vector<1x512xf32>
    %10 = arith.mulf %9, %7 : vector<1x512xf32>
    %11 = arith.addf %9, %10 : vector<1x512xf32>
    %c0_3 = arith.constant 0 : index
    %c0_4 = arith.constant 0 : index
    %12 = vector.load %arg2[%c0_3, %c0_4] : memref<1x512xf32, #tpu.memory_space<vmem>>, vector<1x512xf32>
    tpu.vector_store %arg2[%c0_3, %c0_4], %11 {strides = array<i32>} : memref<1x512xf32, #tpu.memory_space<vmem>>, vector<1x512xf32>,
    return
  }
  func.func @transform_0(%arg0: i32) -> (i32, i32) {
    %c0_i32 = arith.constant 0 : i32
    %c0_i32_0 = arith.constant 0 : i32
    return %arg0, %c0_i32 : i32, i32
  }
  func.func @transform_1(%arg0: i32) -> (i32, i32) {
    %c0_i32 = arith.constant 0 : i32
    %c0_i32_0 = arith.constant 0 : i32
    return %arg0, %c0_i32 : i32, i32
  }
}

</mosaic_0001>

<llo_original>
// kernel: tpu_custom_call.1
$region0: #{tpu_custom_call.1}
  #allocation0 [shape = 'u32[]', space=smem, size = 0x4, offset = 0x4, fixed_abs, tag = 'smem constant byte address 0x4 - core index']
  #allocation1 [shape = 'u32[144,128]{1,0:T(1,128)}', space=vmem, size = 0x12000, scoped, tag = 'internal scratch']
  %s0 = inlined_call_operand.hbm [shape: f32[1,512], index: 0, kind: input, shape index: {}]
  %s1 = inlined_call_operand.hbm [shape: f32[1,512], index: 1, kind: output, shape index: {}]
  %s2 = sld [smem:[#allocation0]]
  $region18: #{tpu_custom_call.1} parent=0
    _
  %s4 = ssub.s32 1, %s2
  %s5 = scalar_select 0, %s4, %s2
  $region1: #{tpu_custom_call.1} parent=0
    #allocation2 [shape = 'u8[2048]{0}', space=vmem, size = 0x800, scoped, tag = 'input window, operand 0, single buffered']
    #allocation3 [shape = 's32[1]{0}', space=sflag, size = 0x4, scoped, tag = 'scoped memory for tpu_custom_call.1']
    #allocation4 [shape = 's32[1]{0}', space=sflag, size = 0x4, scoped, tag = 'scoped memory for tpu_custom_call.1']
    #allocation5 [shape = 'u8[2048]{0}', space=vmem, size = 0x800, scoped, tag = 'output window, operand 0, single buffered']
    %6 = vsyncpa [#allocation3], 0
    %7 = vsyncpa [#allocation4], 0
    // Predicated region
    $region2: #{tpu_custom_call.1} parent=1 // pred_check
      _
    $region3: #{tpu_custom_call.1} parent=1 // pred_check_branch
      %9 = sbr.rel (0) target = $region5
    $region4: #{tpu_custom_call.1} parent=1 // pred_region
      %s11 = ssub.s32 64, 64
      %12 = vsyncadd [#allocation3], %s11
      %s14 = sshll.u32 [#allocation2], 4
      %s15 = int_to_ptr.vmem [resolvable:$true] %s14
      %17 = dma.hbm_to_vmem [thread:$0]  %s0, 64, %s15, [#allocation3]
    $region5: #{tpu_custom_call.1} parent=1 // pred_fallthru
      _
    // Predicated region
    $region6: #{tpu_custom_call.1} parent=1 // pred_check
      _
    $region7: #{tpu_custom_call.1} parent=1 // pred_check_branch
      %19 = sbr.rel (0) target = $region9
    $region8: #{tpu_custom_call.1} parent=1 // pred_region
      %20 = dma.done [#allocation3], 64
    $region9: #{tpu_custom_call.1} parent=1 // pred_fallthru
      _
    %v21 = vld [vmem:[#allocation2] sm:$0xf]
    %v22 = vmul.f32 %v21, %v21
    %v23 = vmul.f32 %v22, 0.035677407
    %v24 = vadd.f32 %v23, 0.7978846
    %v25 = vmul.f32 %v21, %v24
    %v26 = vtanh.pop %v25
    %v27 = vmul.f32 %v21, 0.5
    %v28 = vmul.f32 %v27, %v26
    %v29 = vadd.f32 %v27, %v28
    %v30 = vlaneseq
    %vm31 = vcmp.ge.s32.totalorder %v30, 0
    %vm32 = vcmp.lt.s32.totalorder %v30, 512
    %vm33 = vmand %vm31, %vm32
    %34 = vst.msk [vmem:[#allocation5] sm:$0xf] %vm33, %v29
    // Predicated region
    $region10: #{tpu_custom_call.1} parent=1 // pred_check
      _
    $region11: #{tpu_custom_call.1} parent=1 // pred_check_branch
      %36 = sbr.rel (0) target = $region13
    $region12: #{tpu_custom_call.1} parent=1 // pred_region
      %s38 = ssub.s32 64, 64
      %39 = vsyncadd [#allocation4], %s38
      %s41 = sshll.u32 [#allocation5], 4
      %s42 = int_to_ptr.vmem [resolvable:$true] %s41
      %44 = dma.vmem_to_hbm [thread:$0]  %s42, 64, %s1, [#allocation4]
    $region13: #{tpu_custom_call.1} parent=1 // pred_fallthru
      _
    // Predicated region
    $region14: #{tpu_custom_call.1} parent=1 // pred_check
      _
    $region15: #{tpu_custom_call.1} parent=1 // pred_check_branch
      %46 = sbr.rel (0) target = $region17
    $region16: #{tpu_custom_call.1} parent=1 // pred_region
      %47 = dma.done [#allocation4], 64
    $region17: #{tpu_custom_call.1} parent=1 // pred_fallthru
      _
    %48 = vsyncpa [#allocation3], 1
    %49 = vsyncpa [#allocation4], 1

</llo_original>
